<compile_context>
chip_gen: v7x
topology: tpu7x:2x2x1
jax: 0.10.0
libtpu: 0.0.40
codegen_flags: <defaults>
</compile_context>

<pallas_src>
import jax
import jax.numpy as jnp
from jax.experimental import pallas as pl
from jax.experimental.pallas import tpu as pltpu

MAX_NUM_CARD = 54           # in_features
NUM_CARD_EMB_DIM = 10       # out_features
DEFAULT_TB = 8192           # batch tile (rows), multiple of 8 sublanes


def _round_up(n, m):
    return ((n + m - 1) // m) * m


def _linear_kernel(x_ref, wt_ref, b_ref, o_ref):
    # x_ref: (TB, 54) f32, wt_ref: (54, 10) f32, b_ref: (1, 10) f32,
    # o_ref: (TB, 10) f32.  f32 MXU matmul + f32 VPU bias epilogue.
    acc = jnp.dot(x_ref[...], wt_ref[...],
                  preferred_element_type=jnp.float32)
    o_ref[...] = acc + b_ref[...]


def prepare_params(weight, bias):
    """One-time param prep: pre-transpose weight, reshape bias.

    weight: (10, 54) f32 (PyTorch nn.Linear layout)
    bias:   (10,)    f32
    returns (wt (54, 10) f32, b2 (1, 10) f32)
    """
    wt = jnp.asarray(weight, jnp.float32).T
    b2 = jnp.asarray(bias, jnp.float32).reshape(1, NUM_CARD_EMB_DIM)
    return wt, b2


def _pick_tb(B):
    if B <= 8:
        return max(8, _round_up(max(B, 1), 8))
    # Keep >= 2 grid steps (v7x megacore sharding), but never exceed
    # DEFAULT_TB (VMEM budget / pipelining granularity).
    half = _round_up(pl.cdiv(B, 2), 8)
    return min(DEFAULT_TB, half)


def num_card_embedding(x, wt, b2, tb=None):
    """Equivalent of NumCardEmbedding.forward: x @ weight.T + bias.

    x:  (B, 54) float32
    wt: (54, 10) float32  (pre-transposed weight from prepare_params)
    b2: (1, 10)  float32
    returns (B, 10) float32
    """
    B = x.shape[0]
    if B == 0:
        return jnp.zeros((0, NUM_CARD_EMB_DIM), jnp.float32)

    if tb is None:
        tb = _pick_tb(B)
    tb = max(8, _round_up(tb, 8))

    grid = (pl.cdiv(B, tb),)

    x = x.astype(jnp.float32)

    cost = pl.CostEstimate(
        flops=2 * B * MAX_NUM_CARD * NUM_CARD_EMB_DIM,
        transcendentals=0,
        bytes_accessed=(B * MAX_NUM_CARD * 4            # x read
                        + B * NUM_CARD_EMB_DIM * 4      # out write
                        + MAX_NUM_CARD * NUM_CARD_EMB_DIM * 4
                        + NUM_CARD_EMB_DIM * 4),
    )

    return pl.pallas_call(
        _linear_kernel,
        out_shape=jax.ShapeDtypeStruct((B, NUM_CARD_EMB_DIM), jnp.float32),
        grid_spec=pl.GridSpec(
            grid=grid,
            in_specs=[
                # Batch-tiled input; last dim 54 == full array dim (allowed).
                pl.BlockSpec((tb, MAX_NUM_CARD), lambda i: (i, 0)),
                # Weight / bias: constant index map -> VMEM-resident.
                pl.BlockSpec((MAX_NUM_CARD, NUM_CARD_EMB_DIM), lambda i: (0, 0)),
                pl.BlockSpec((1, NUM_CARD_EMB_DIM), lambda i: (0, 0)),
            ],
            out_specs=pl.BlockSpec((tb, NUM_CARD_EMB_DIM), lambda i: (i, 0)),
        ),
        compiler_params=pltpu.CompilerParams(
            dimension_semantics=("parallel",),
            # Double-buffered (8192,54)f32 + (8192,10)f32 tiles lane-pad to
            # ~16-17 MiB; raise above v5e's 16 MiB scoped default, stay well
            # under v7x's 64 MiB/TC physical VMEM.
            vmem_limit_bytes=48 * 1024 * 1024,
        ),
        cost_estimate=cost,
    )(x, wt, b2)


def init_params(key):
    # Deterministic init mimicking nn.Linear: U(-1/sqrt(in), 1/sqrt(in)).
    kw, kb = jax.random.split(key)
    bound = 1.0 / (MAX_NUM_CARD ** 0.5)
    weight = jax.random.uniform(
        kw, (NUM_CARD_EMB_DIM, MAX_NUM_CARD), jnp.float32,
        minval=-bound, maxval=bound)
    bias = jax.random.uniform(
        kb, (NUM_CARD_EMB_DIM,), jnp.float32, minval=-bound, maxval=bound)
    return weight, bias


if __name__ == "__main__":
    key = jax.random.PRNGKey(0)
    kx, kp = jax.random.split(key)

    weight, bias = init_params(kp)
    wt, b2 = prepare_params(weight, bias)   # precomputed once

    # Small ragged batch (B=20, tile=8) to exercise the clipped last block +
    # a multi-step grid.
    B = 20
    x = jax.random.normal(kx, (B, MAX_NUM_CARD), jnp.float32)

    out = num_card_embedding(x, wt, b2, tb=8)
    out = jax.block_until_ready(out)
    assert out.shape == (B, NUM_CARD_EMB_DIM)

    # Reference: full-f32 PyTorch nn.Linear semantics.
    ref = x @ weight.T + bias
    assert jnp.allclose(out, ref, atol=2e-2, rtol=2e-2), (
        float(jnp.max(jnp.abs(out - ref))))

    # Default (auto-tile) path, including the >=2-step grid cap.
    out2 = jax.block_until_ready(num_card_embedding(x, wt, b2))
    assert out2.shape == (B, NUM_CARD_EMB_DIM)
    assert jnp.allclose(out2, ref, atol=2e-2, rtol=2e-2)

    # Tiny single-tile batch (B=8, single grid step).
    out3 = jax.block_until_ready(num_card_embedding(x[:8], wt, b2))
    assert out3.shape == (8, NUM_CARD_EMB_DIM)
    assert jnp.allclose(out3, ref[:8], atol=2e-2, rtol=2e-2)

    print("KERNEL_OK")
</pallas_src>

<mosaic_0001>
module attributes {stable_mosaic.version = 11 : i64} {
  func.func @_linear_kernel(%arg0: i32, %arg1: memref<8x54xf32, #tpu.memory_space<vmem>>, %arg2: memref<54x10xf32, #tpu.memory_space<vmem>>, %arg3: memref<1x10xf32, #tpu.memory_space<vmem>>, %arg4: memref<8x10xf32, #tpu.memory_space<vmem>>) attributes {dimension_semantics = [#tpu.dimension_semantics<parallel>], iteration_bounds = array<i64: 3>, scalar_prefetch = 0 : i64, scratch_operands = 0 : i64, tpu.core_type = #tpu.core_type<tc>, window_params = [{transform_indices = @transform_0, window_bounds = array<i64: 8, 54>}, {pipeline_mode = #tpu.pipeline_mode<synchronous>, transform_indices = @transform_1, window_bounds = array<i64: 54, 10>}, {pipeline_mode = #tpu.pipeline_mode<synchronous>, transform_indices = @transform_2, window_bounds = array<i64: 1, 10>}, {transform_indices = @transform_3, window_bounds = array<i64: 8, 10>}]} {
    %c0 = arith.constant 0 : index
    %c0_0 = arith.constant 0 : index
    %0 = vector.load %arg1[%c0, %c0_0] : memref<8x54xf32, #tpu.memory_space<vmem>>, vector<8x54xf32>
    %c0_1 = arith.constant 0 : index
    %c0_2 = arith.constant 0 : index
    %1 = vector.load %arg2[%c0_1, %c0_2] : memref<54x10xf32, #tpu.memory_space<vmem>>, vector<54x10xf32>
    %cst = arith.constant dense<0.000000e+00> : vector<8x10xf32>
    %2 = tpu.matmul %0, %1, %cst {dimension_numbers = #tpu.dot_dimension_numbers<[1], [0], [0], [1], [0, 0, 1, 1], [], []>} : vector<8x54xf32>, vector<54x10xf32>, vector<8x10xf32> -> vector<8x10xf32>
    %c0_3 = arith.constant 0 : index
    %c0_4 = arith.constant 0 : index
    %3 = vector.load %arg3[%c0_3, %c0_4] : memref<1x10xf32, #tpu.memory_space<vmem>>, vector<1x10xf32>
    %4 = vector.broadcast %3 : vector<1x10xf32> to vector<8x10xf32>
    %5 = arith.addf %2, %4 : vector<8x10xf32>
    %c0_5 = arith.constant 0 : index
    %c0_6 = arith.constant 0 : index
    %6 = vector.load %arg4[%c0_5, %c0_6] : memref<8x10xf32, #tpu.memory_space<vmem>>, vector<8x10xf32>
    tpu.vector_store %arg4[%c0_5, %c0_6], %5 {strides = array<i32>} : memref<8x10xf32, #tpu.memory_space<vmem>>, vector<8x10xf32>,
    return
  }
  func.func @transform_0(%arg0: i32) -> (i32, i32) {
    %c0_i32 = arith.constant 0 : i32
    %c0_i32_0 = arith.constant 0 : i32
    return %arg0, %c0_i32 : i32, i32
  }
  func.func @transform_1(%arg0: i32) -> (i32, i32) {
    %c0_i32 = arith.constant 0 : i32
    %c0_i32_0 = arith.constant 0 : i32
    %c0_i32_1 = arith.constant 0 : i32
    return %c0_i32, %c0_i32_0 : i32, i32
  }
  func.func @transform_2(%arg0: i32) -> (i32, i32) {
    %c0_i32 = arith.constant 0 : i32
    %c0_i32_0 = arith.constant 0 : i32
    %c0_i32_1 = arith.constant 0 : i32
    return %c0_i32, %c0_i32_0 : i32, i32
  }
  func.func @transform_3(%arg0: i32) -> (i32, i32) {
    %c0_i32 = arith.constant 0 : i32
    %c0_i32_0 = arith.constant 0 : i32
    return %arg0, %c0_i32 : i32, i32
  }
}

</mosaic_0001>

<llo_original>
// kernel: tpu_custom_call.1
$region0: #{tpu_custom_call.1}
  #allocation0 [shape = 'u32[]', space=smem, size = 0x4, offset = 0x4, fixed_abs, tag = 'smem constant byte address 0x4 - core index']
  #allocation1 [shape = 'u32[144,128]{1,0:T(1,128)}', space=vmem, size = 0x12000, scoped, tag = 'internal scratch']
  %s0 = inlined_call_operand.vmem [shape: f32[20,54], index: 0, kind: input, shape index: {}]
  %s1 = inlined_call_operand.vmem [shape: f32[54,10], index: 1, kind: input, shape index: {}]
  %s2 = inlined_call_operand.vmem [shape: f32[1,10], index: 2, kind: input, shape index: {}]
  %s3 = inlined_call_operand.vmem [shape: f32[20,10], index: 3, kind: output, shape index: {}]
  %s4 = sld [smem:[#allocation0]]
  $region45: #{tpu_custom_call.1} parent=0
    _
  %s6 = ssub.s32 1, %s4
  %s7 = scalar_select 0, %s6, %s4
  loop: start=0, step=1, limit=5
  $region2: #{tpu_custom_call.1} parent=0 // loop_pre_header
    _
  $region3: #{tpu_custom_call.1} parent=0 // loop_header
    %s9 = sphi 0, %s13
    %p10 = scmp.ge.s32.totalorder %s9, 5
    %s19 = sphi 0, %s21
    %s22 = sphi 0, %s19
    %s23 = sphi 0, %s22
    %s39 = sphi 0, %s23
    %s43 = sphi 0, %s43
    %s45 = sphi 0, %s43
    %s46 = sphi 0, %s45
    %s60 = sphi 0, %s46
    %s64 = sphi 0, %s64
    %s66 = sphi 0, %s64
    %s67 = sphi 0, %s66
    %s81 = sphi 0, %s67
    %s87 = sphi 0, %s89
    %s90 = sphi 0, %s87
    %s91 = sphi 0, %s90
    %s107 = sphi 0, %s91
  $region4: #{tpu_custom_call.1} parent=0 // loop_header_branch
    %12 = sbr.rel (%p10) target = $region8
  $region5: #{tpu_custom_call.1} parent=0 // loop_body
    %s14 = ssub.s32 %s9, 1
    %s15 = ssub.s32 %s9, 2
    %s16 = sadd.s32 %s9, 1
    %s17 = ssub.s32 %s9, %s16
    %p18 = scmp.eq.s32.totalorder %s17, 0
    %s20 = sadd.s32 %s19, 1
    %s21 = scalar_select %p18, %s19, %s20
    %p24 = pneg %p18
    %p25 = scmp.eq.s32.totalorder %s9, 2
    %p26 = por %p24, %p25
    %p27 = scmp.ne.s32.totalorder %s19, %s22
    %p28 = scmp.eq.s32.totalorder %s9, 0
    %p29 = por %p27, %p28
    %p30 = scmp.ne.s32.totalorder %s19, %s22
    %p31 = scmp.eq.s32.totalorder %s14, 2
    %p32 = por %p30, %p31
    %p33 = scmp.ne.s32.totalorder %s22, %s23
    %p34 = scmp.eq.s32.totalorder %s14, 0
    %p35 = por %p33, %p34
    %p36 = scmp.ne.s32.totalorder %s22, %s23
    %p37 = scmp.eq.s32.totalorder %s15, 2
    %p38 = por %p36, %p37
    %p40 = scmp.ne.s32.totalorder %s23, %s39
    %p41 = scmp.eq.s32.totalorder %s15, 0
    %p42 = por %p40, %p41
    %s44 = sadd.s32 %s43, 1
    %p47 = scmp.eq.s32.totalorder %s9, 2
    %p48 = scmp.ne.s32.totalorder %s43, %s45
    %p49 = scmp.eq.s32.totalorder %s9, 0
    %p50 = por %p48, %p49
    %p51 = scmp.ne.s32.totalorder %s43, %s45
    %p52 = scmp.eq.s32.totalorder %s14, 2
    %p53 = por %p51, %p52
    %p54 = scmp.ne.s32.totalorder %s45, %s46
    %p55 = scmp.eq.s32.totalorder %s14, 0
    %p56 = por %p54, %p55
    %p57 = scmp.ne.s32.totalorder %s45, %s46
    %p58 = scmp.eq.s32.totalorder %s15, 2
    %p59 = por %p57, %p58
    %p61 = scmp.ne.s32.totalorder %s46, %s60
    %p62 = scmp.eq.s32.totalorder %s15, 0
    %p63 = por %p61, %p62
    %s65 = sadd.s32 %s64, 1
    %p68 = scmp.eq.s32.totalorder %s9, 2
    %p69 = scmp.ne.s32.totalorder %s64, %s66
    %p70 = scmp.eq.s32.totalorder %s9, 0
    %p71 = por %p69, %p70
    %p72 = scmp.ne.s32.totalorder %s64, %s66
    %p73 = scmp.eq.s32.totalorder %s14, 2
    %p74 = por %p72, %p73
    %p75 = scmp.ne.s32.totalorder %s66, %s67
    %p76 = scmp.eq.s32.totalorder %s14, 0
    %p77 = por %p75, %p76
    %p78 = scmp.ne.s32.totalorder %s66, %s67
    %p79 = scmp.eq.s32.totalorder %s15, 2
    %p80 = por %p78, %p79
    %p82 = scmp.ne.s32.totalorder %s67, %s81
    %p83 = scmp.eq.s32.totalorder %s15, 0
    %p84 = por %p82, %p83
    %s85 = ssub.s32 %s9, %s16
    %p86 = scmp.eq.s32.totalorder %s85, 0
    %s88 = sadd.s32 %s87, 1
    %s89 = scalar_select %p86, %s87, %s88
    %p92 = pneg %p86
    %p93 = scmp.eq.s32.totalorder %s9, 2
    %p94 = por %p92, %p93
    %p95 = scmp.ne.s32.totalorder %s87, %s90
    %p96 = scmp.eq.s32.totalorder %s9, 0
    %p97 = por %p95, %p96
    %p98 = scmp.ne.s32.totalorder %s87, %s90
    %p99 = scmp.eq.s32.totalorder %s14, 2
    %p100 = por %p98, %p99
    %p101 = scmp.ne.s32.totalorder %s90, %s91
    %p102 = scmp.eq.s32.totalorder %s14, 0
    %p103 = por %p101, %p102
    %p104 = scmp.ne.s32.totalorder %s90, %s91
    %p105 = scmp.eq.s32.totalorder %s15, 2
    %p106 = por %p104, %p105
    %p108 = scmp.ne.s32.totalorder %s91, %s107
    %p109 = scmp.eq.s32.totalorder %s15, 0
    %p110 = por %p108, %p109
    %p111 = scmp.le.s32.totalorder 1, %s9
    %p112 = scmp.lt.s32.totalorder %s9, 4
    %p113 = pnand %p111, %p112
    %p114 = pneg %p113
    // Predicated region
    $region9: #{tpu_custom_call.1} parent=5 // pred_check
      _
    $region10: #{tpu_custom_call.1} parent=5 // pred_check_branch
      %116 = sbr.rel (%p113) target = $region12
    $region11: #{tpu_custom_call.1} parent=5 // pred_region
      %s117 = ssub.s32 %s9, 1
      // Predicated region
      $region13: #{tpu_custom_call.1} parent=11 // pred_check
        %p118 = pneg %p56
      $region14: #{tpu_custom_call.1} parent=11 // pred_check_branch
        %120 = sbr.rel (%p118) target = $region16
      $region15: #{tpu_custom_call.1} parent=11 // pred_region
        _
      $region16: #{tpu_custom_call.1} parent=11 // pred_fallthru
        _
      // Predicated region
      $region17: #{tpu_custom_call.1} parent=11 // pred_check
        %p121 = pneg %p77
      $region18: #{tpu_custom_call.1} parent=11 // pred_check_branch
        %123 = sbr.rel (%p121) target = $region20
      $region19: #{tpu_custom_call.1} parent=11 // pred_region
        _
      $region20: #{tpu_custom_call.1} parent=11 // pred_fallthru
        _
    $region12: #{tpu_custom_call.1} parent=5 // pred_fallthru
      _
    %p124 = scmp.lt.s32.totalorder %s9, 3
    // Predicated region
    $region21: #{tpu_custom_call.1} parent=5 // pred_check
      %p125 = pneg %p124
    $region22: #{tpu_custom_call.1} parent=5 // pred_check_branch
      %127 = sbr.rel (%p125) target = $region24
    $region23: #{tpu_custom_call.1} parent=5 // pred_region
      // Predicated region
      $region25: #{tpu_custom_call.1} parent=23 // pred_check
        %p128 = pneg %p29
      $region26: #{tpu_custom_call.1} parent=23 // pred_check_branch
        %130 = sbr.rel (%p128) target = $region28
      $region27: #{tpu_custom_call.1} parent=23 // pred_region
        %p131 = scmp.lt.s32.totalorder %s9, 2
        %s132 = scalar_select %p131, %s9, 2
        %s133 = smul.addr %s132, 8
        %s134 = scalar_lea.vmem %s0, %s133
      $region28: #{tpu_custom_call.1} parent=23 // pred_fallthru
        _
    $region24: #{tpu_custom_call.1} parent=5 // pred_fallthru
      _
    %p135 = scmp.le.s32.totalorder 1, %s9
    %p136 = scmp.lt.s32.totalorder %s9, 4
    %p137 = pnand %p135, %p136
    %p138 = pneg %p137
    // Predicated region
    $region29: #{tpu_custom_call.1} parent=5 // pred_check
      _
    $region30: #{tpu_custom_call.1} parent=5 // pred_check_branch
      %140 = sbr.rel (%p137) target = $region32
    $region31: #{tpu_custom_call.1} parent=5 // pred_region
      %s141 = ssub.s32 %s9, 1
      %p142 = scmp.lt.s32.totalorder %s14, 2
      %s143 = scalar_select %p142, %s14, 2
      %s144 = smul.addr %s143, 8
      %s145 = scalar_lea.vmem %s0, %s144
      %p146 = pneg %p35
      %p147 = pneg %p32
      %p148 = pneg %p56
      %p149 = pneg %p53
      %p150 = pneg %p77
      %p151 = pneg %p74
      %p152 = pneg %p103
      %p153 = pneg %p100
      %p154 = scmp.lt.s32.totalorder %s14, 2
      %s155 = scalar_select %p154, %s14, 2
      %s156 = smul.addr %s155, 8
      %s157 = scalar_lea.vmem %s3, %s156
      %p158 = scmp.lt.s32.totalorder %s14, 2
      %s159 = scalar_select %p158, %s14, 2
      %s160 = smul.addr %s159, 8
      %s161 = scalar_lea.vmem %s0, %s160
      %p162 = scmp.lt.s32.totalorder %s14, 2
      %s163 = scalar_select %p162, %s14, 2
      %s164 = smul.addr %s163, 8
      %s165 = scalar_lea.vmem %s3, %s164
      %v166 = vld [vmem:[%s161] sm:$0xff]
      %v167 = vld [vmem:[%s1] sm:$0xff]
      %v168 = vld [vmem:[%s1 + $0x8] sm:$0xff]
      %v169 = vld [vmem:[%s1 + $0x10] sm:$0xff]
      %v170 = vld [vmem:[%s1 + $0x18] sm:$0xff]
      %v171 = vld [vmem:[%s1 + $0x20] sm:$0xff]
      %v172 = vld [vmem:[%s1 + $0x28] sm:$0xff]
      %v173 = vld [vmem:[%s1 + $0x30] sm:$0x3f]
      %v174 = vld [vmem:[%s2] sm:$0x1]
      %v176 = vlaneseq
      %v177 = vshrl.u32 %v176, 7
      %v178 = vsub.s32 0, %v177
      %v179 = vrot.slane %v174, %v178
      %vm181 = vcmask 441344
      %v183 = vsel %vm181, %v166, 0
      %vm185 = vcmask 1045504
      %v187 = vsel %vm185, %v173, 0
      %189 = vmatprep.subr.mxu0 0.0
      %190 = vmatpush1.msra.mxu0 %v167
      %191 = vmatprep.subr.mxu0 0.0
      %192 = vmatpush1.msra.mxu0 %v168
      %193 = vmatprep.subr.mxu0 0.0
      %194 = vmatpush1.msra.mxu0 %v169
      %195 = vmatprep.subr.mxu0 0.0
      %196 = vmatpush1.msra.mxu0 %v170
      %197 = vmatprep.subr.mxu0 0.0
      %198 = vmatpush1.msra.mxu0 %v171
      %199 = vmatprep.subr.mxu0 0.0
      %200 = vmatpush1.msra.mxu0 %v172
      %201 = vmatprep.subr.mxu0 0.0
      %202 = vmatpush1.msra.mxu0 %v187
      %203 = vmatprep.subr.mxu0 0.0
      %204 = vmatpush1.msra.mxu0 0.0
      %205 = vmatprep.subr.mxu0 0.0
      %206 = vmatpush1.msra.mxu0 0.0
      %207 = vmatprep.subr.mxu0 0.0
      %208 = vmatpush1.msra.mxu0 0.0
      %209 = vmatprep.subr.mxu0 0.0
      %210 = vmatpush1.msra.mxu0 0.0
      %211 = vmatprep.subr.mxu0 0.0
      %212 = vmatpush1.msra.mxu0 0.0
      %213 = vmatprep.subr.mxu0 0.0
      %214 = vmatpush1.msra.mxu0 0.0
      %215 = vmatprep.subr.mxu0 0.0
      %216 = vmatpush1.msra.mxu0 0.0
      %217 = vmatprep.subr.mxu0 0.0
      %218 = vmatpush1.msra.mxu0 0.0
      %219 = vmatprep.subr.mxu0 0.0
      %220 = vmatpush1.msra.mxu0 0.0
      %221 = vmatprep.subr.mxu0 0.0
      %222 = vmatpush1.msra.mxu0 0.0
      %223 = vmatprep.subr.mxu0 0.0
      %224 = vmatpush1.msra.mxu0 0.0
      %225 = vmatprep.subr.mxu0 0.0
      %226 = vmatpush1.msra.mxu0 0.0
      %227 = vmatprep.subr.mxu0 0.0
      %228 = vmatpush1.msra.mxu0 0.0
      %229 = vmatprep.subr.mxu0 0.0
      %230 = vmatpush1.msra.mxu0 0.0
      %231 = vmatprep.subr.mxu0 0.0
      %232 = vmatpush1.msra.mxu0 0.0
      %233 = vmatprep.subr.mxu0 0.0
      %234 = vmatpush1.msra.mxu0 0.0
      %235 = vmatprep.subr.mxu0 0.0
      %236 = vmatpush1.msra.mxu0 0.0
      %237 = vmatprep.subr.mxu0 0.0
      %238 = vmatpush1.msra.mxu0 0.0
      %239 = vmatprep.subr.mxu0 0.0
      %240 = vmatpush1.msra.mxu0 0.0
      %241 = vmatprep.subr.mxu0 0.0
      %242 = vmatpush1.msra.mxu0 0.0
      %243 = vmatprep.subr.mxu0 0.0
      %244 = vmatpush1.msra.mxu0 0.0
      %245 = vmatprep.subr.mxu0 0.0
      %246 = vmatpush1.msra.mxu0 0.0
      %247 = vmatprep.subr.mxu0 0.0
      %248 = vmatpush1.msra.mxu0 0.0
      %249 = vmatprep.subr.mxu0 0.0
      %250 = vmatpush1.msra.mxu0 0.0
      %251 = vmatprep.subr.mxu0 0.0
      %252 = vmatpush1.msra.mxu0 0.0
      %253 = vmatprep.mubr.f32.mxu0 0.0
      %254 = vmatmul.mubr.f32.gmra.mrb[0].mxu0 %v183
      %v255 = vpop.f32.mrb[0].mxu0
      %v256 = vadd.f32 %v179, %v255
      %v257 = vpop.f32.mrb[0].mxu0
      %258 = vdwg.mxu0
      %vm259 = vcmask 80896
      %260 = vst.msk [vmem:[%s165] sm:$0xff] %vm259, %v256
      %p261 = scmp.lt.s32.totalorder %s14, 2
      %s262 = scalar_select %p261, %s14, 2
      %s263 = smul.addr %s262, 8
      %s264 = scalar_lea.vmem %s3, %s263
      // Predicated region
      $region33: #{tpu_custom_call.1} parent=31 // pred_check
        %p265 = pneg %p100
      $region34: #{tpu_custom_call.1} parent=31 // pred_check_branch
        %267 = sbr.rel (%p265) target = $region36
      $region35: #{tpu_custom_call.1} parent=31 // pred_region
        _
      $region36: #{tpu_custom_call.1} parent=31 // pred_fallthru
        _
    $region32: #{tpu_custom_call.1} parent=5 // pred_fallthru
      _
    %p268 = scmp.le.s32.totalorder 2, %s9
    // Predicated region
    $region37: #{tpu_custom_call.1} parent=5 // pred_check
      %p269 = pneg %p268
    $region38: #{tpu_custom_call.1} parent=5 // pred_check_branch
      %271 = sbr.rel (%p269) target = $region40
    $region39: #{tpu_custom_call.1} parent=5 // pred_region
      %s272 = ssub.s32 %s9, 2
      // Predicated region
      $region41: #{tpu_custom_call.1} parent=39 // pred_check
        %p273 = pneg %p106
      $region42: #{tpu_custom_call.1} parent=39 // pred_check_branch
        %275 = sbr.rel (%p273) target = $region44
      $region43: #{tpu_custom_call.1} parent=39 // pred_region
        %p276 = scmp.lt.s32.totalorder %s15, 2
        %s277 = scalar_select %p276, %s15, 2
        %s278 = smul.addr %s277, 8
        %s279 = scalar_lea.vmem %s3, %s278
      $region44: #{tpu_custom_call.1} parent=39 // pred_fallthru
        _
    $region40: #{tpu_custom_call.1} parent=5 // pred_fallthru
      _
  $region6: #{tpu_custom_call.1} parent=0 // loop_footer
    %s13 = sadd.s32 1, %s9
  $region7: #{tpu_custom_call.1} parent=0 // loop_footer_branch
    %8 = sbr.rel target = $region3
  $region8: #{tpu_custom_call.1} parent=0 // loop_exit
    _

</llo_original>
